<compile_context>
chip_gen: v5e
topology: v5e:2x2
jax: 0.10.0
libtpu: 0.0.40
codegen_flags: <defaults>
</compile_context>

<pallas_src>
import jax
import jax.numpy as jnp
from typing import NamedTuple
from jax.experimental import pallas as pl
from jax.experimental.pallas import tpu as pltpu

_LANE = 128   # lane width
_ROW_Q = 16   # bf16 sublane packing quantum (batch-tile granularity)
_SUB = 8      # f32 sublane quantum (bias blocks pad to 8 rows in VMEM)


def _round_up(n: int, m: int) -> int:
    return ((n + m - 1) // m) * m


def _vmem_capacity_bytes() -> int:
    try:
        info = pltpu.get_tpu_info()
        for name in ("vmem_capacity_bytes", "vmem_bytes", "vmem_size_bytes"):
            v = getattr(info, name, None)
            if isinstance(v, int) and v > 0:
                return v
    except Exception:
        pass
    return 64 << 20  # conservative floor (v7x per-TC)


def _num_tensorcores() -> int:
    try:
        info = pltpu.get_tpu_info()
        for name in ("num_cores", "tensorcores_per_chip", "cores_per_chip"):
            v = getattr(info, name, None)
            if isinstance(v, int) and v > 0:
                return v
    except Exception:
        pass
    try:
        v = getattr(jax.devices()[0], "num_cores", None)
        if isinstance(v, int) and v > 0:
            return v
    except Exception:
        pass
    return 1


class PhiConfig(NamedTuple):
    E: int
    H: int
    E_pad: int
    H_pad: int
    resident: bool
    vmem_cap: int
    num_cores: int


# ---------------------------------------------------------------------------
# Kernels
# ---------------------------------------------------------------------------
def _phi_kernel_resident(x_ref, w1_ref, b1_ref, w2_ref, b2_ref, o_ref):
    """Fully-resident weights: one shot per (batch-tile, out-E-tile)."""
    h = jnp.dot(x_ref[...], w1_ref[...], preferred_element_type=jnp.float32)
    h = jnp.maximum(h + b1_ref[...], 0.0)
    y = jnp.dot(h.astype(w2_ref.dtype), w2_ref[...],
                preferred_element_type=jnp.float32)
    o_ref[...] = (y + b2_ref[...]).astype(o_ref.dtype)


def _phi_kernel_streamed_f32(x_ref, w1_ref, b1_ref, w2_ref, b2_ref, o_ref):
    """H-streamed, f32 output: accumulate directly in the resident out block."""
    k = pl.program_id(1)

    @pl.when(k == 0)
    def _init():
        o_ref[...] = jnp.zeros_like(o_ref)

    h = jnp.dot(x_ref[...], w1_ref[...], preferred_element_type=jnp.float32)
    h = jnp.maximum(h + b1_ref[...], 0.0)
    o_ref[...] += jnp.dot(h.astype(w2_ref.dtype), w2_ref[...],
                          preferred_element_type=jnp.float32)

    @pl.when(k == pl.num_programs(1) - 1)
    def _finalize():
        o_ref[...] += b2_ref[...]


def _phi_kernel_streamed_acc(x_ref, w1_ref, b1_ref, w2_ref, b2_ref, o_ref,
                             acc_ref):
    """H-streamed, narrow output dtype: f32 scratch accumulator, cast once."""
    k = pl.program_id(1)

    @pl.when(k == 0)
    def _init():
        acc_ref[...] = jnp.zeros_like(acc_ref)

    h = jnp.dot(x_ref[...], w1_ref[...], preferred_element_type=jnp.float32)
    h = jnp.maximum(h + b1_ref[...], 0.0)
    acc_ref[...] += jnp.dot(h.astype(w2_ref.dtype), w2_ref[...],
                            preferred_element_type=jnp.float32)

    @pl.when(k == pl.num_programs(1) - 1)
    def _finalize():
        o_ref[...] = (acc_ref[...] + b2_ref[...]).astype(o_ref.dtype)


# ---------------------------------------------------------------------------
# Parameter preparation (hoisted out of the per-call path)
# ---------------------------------------------------------------------------
def prepare_params(w1, b1, w2, b2):
    """Pad + bf16-cast the Linear parameters ONCE.

    w1: (E, 2E) == PyTorch W1.T     b1: (2E,) or (1, 2E)
    w2: (2E, E) == PyTorch W2.T     b2: (E,)  or (1, E)
    Zero padding is exact through matmul / bias / ReLU.
    """
    E, H = w1.shape
    assert w2.shape == (H, E)
    b1 = jnp.asarray(b1).reshape(1, -1)
    b2 = jnp.asarray(b2).reshape(1, -1)

    vmem_cap = _vmem_capacity_bytes()
    num_cores = _num_tensorcores()

    E_pad = _round_up(E, _LANE)
    H_pad = _round_up(H, _LANE)

    # Full residency whenever both bf16 weight matrices fit well under VMEM:
    # ~57 MiB threshold on 128 MiB parts (v5e/v6e), ~29 MiB on 64 MiB (v7x).
    resident = 2 * E_pad * H_pad * 2 <= int(0.45 * vmem_cap)
    if not resident:
        # Streaming path: pad H so any tile_h in {512, 256, 128} divides it.
        H_pad = _round_up(H_pad, 512)

    w1p = jnp.pad(w1, ((0, E_pad - E), (0, H_pad - H))).astype(jnp.bfloat16)
    w2p = jnp.pad(w2, ((0, H_pad - H), (0, E_pad - E))).astype(jnp.bfloat16)
    b1p = jnp.pad(b1, ((0, 0), (0, H_pad - H))).astype(jnp.float32)
    b2p = jnp.pad(b2, ((0, 0), (0, E_pad - E))).astype(jnp.float32)

    cfg = PhiConfig(E=E, H=H, E_pad=E_pad, H_pad=H_pad, resident=resident,
                    vmem_cap=vmem_cap, num_cores=num_cores)
    return (w1p, b1p, w2p, b2p), cfg


# ---------------------------------------------------------------------------
# Tile selection with a VMEM-budget feedback loop
# ---------------------------------------------------------------------------
def _select_tiles(B, E_pad, H_pad, out_bytes, resident, vmem_cap):
    budget = min(int(0.80 * vmem_cap), 100 << 20)

    # Larger batch tiles when streaming (arithmetic intensity per streamed
    # weight byte ~ tile_b FLOPs/byte); modest tiles when fully resident.
    tile_b = min(_round_up(B, _ROW_Q), 512 if not resident else 256)
    tile_h = H_pad if resident else min(512, H_pad)

    def vmem_need(tb, th):
        wb = 1 if resident else 2              # weight buffering depth
        n = 2 * tb * E_pad * 2                 # x tile (bf16, double-buffered)
        n += 2 * tb * E_pad * out_bytes        # out tile (double-buffered)
        if not resident and out_bytes != 4:
            n += tb * E_pad * 4                # f32 accumulator scratch
        n += wb * E_pad * th * 2               # W1 chunk(s), bf16
        n += wb * th * E_pad * 2               # W2 chunk(s), bf16
        n += wb * _SUB * th * 4                # b1 (sublane-padded f32)
        n += _SUB * E_pad * 4                  # b2 (single-buffered)
        n += tb * th * (4 + 2)                 # h intermediate (f32 + bf16)
        return n

    while True:
        limit = int(1.3 * vmem_need(tile_b, tile_h)) + (2 << 20)
        if limit <= budget:
            break
        if (not resident) and tile_h > _LANE:
            tile_h //= 2
        elif tile_b > _ROW_Q:
            tile_b //= 2
        else:
            break  # smallest tiles; clamp below and let Mosaic do its best

    limit = min(max(limit, 16 << 20), min(vmem_cap, 100 << 20))
    return tile_b, tile_h, limit


# ---------------------------------------------------------------------------
# Forward
# ---------------------------------------------------------------------------
def phi_forward(x, arrays, cfg: PhiConfig):
    """y = relu(x @ W1 + b1) @ W2 + b2 with pre-prepared (padded, bf16) params."""
    w1p, b1p, w2p, b2p = arrays
    B, E = x.shape
    assert E == cfg.E
    out_dtype = x.dtype
    out_bytes = jnp.dtype(out_dtype).itemsize
    E_pad, H_pad = cfg.E_pad, cfg.H_pad
    BF, F32 = 2, 4

    tile_b, tile_h, vmem_limit = _select_tiles(
        B, E_pad, H_pad, out_bytes, cfg.resident, cfg.vmem_cap)
    B_pad = _round_up(B, tile_b)
    num_b = B_pad // tile_b

    # Per-call activation padding only (weights already padded/cast).
    xp = jnp.pad(x, ((0, B_pad - B), (0, E_pad - E))).astype(jnp.bfloat16)

    def _const(shape, imap):
        # Block index never changes -> single-buffer to halve VMEM footprint.
        return pl.BlockSpec(shape, imap, pipeline_mode=pl.Buffered(1))

    if cfg.resident:
        # Optional output-E split so v7x's 2nd TensorCore is fed at tiny batch.
        num_e, tile_e = 1, E_pad
        if cfg.num_cores >= 2 and num_b == 1 and E_pad % 256 == 0:
            num_e, tile_e = 2, E_pad // 2

        grid = (num_b, num_e)
        if num_e == 1:
            w2_spec = _const((H_pad, tile_e), lambda i, e: (0, e))
            b2_spec = _const((1, tile_e), lambda i, e: (0, e))
        else:
            w2_spec = pl.BlockSpec((H_pad, tile_e), lambda i, e: (0, e))
            b2_spec = pl.BlockSpec((1, tile_e), lambda i, e: (0, e))
        in_specs = [
            pl.BlockSpec((tile_b, E_pad), lambda i, e: (i, 0)),   # x
            _const((E_pad, H_pad), lambda i, e: (0, 0)),          # W1
            _const((1, H_pad), lambda i, e: (0, 0)),              # b1
            w2_spec,                                              # W2
            b2_spec,                                              # b2
        ]
        out_spec = pl.BlockSpec((tile_b, tile_e), lambda i, e: (i, e))
        kernel = _phi_kernel_resident
        scratch = []
        dims = ("parallel", "parallel")

        flops = 2 * B_pad * E_pad * H_pad * num_e + 2 * B_pad * H_pad * E_pad
        w_traffic = (w1p.size * BF + b1p.size * F32
                     + (num_b if num_e > 1 else 1)
                     * (w2p.size * BF + b2p.size * F32))
    else:
        num_h = H_pad // tile_h
        grid = (num_b, num_h)                  # reduction axis (H chunks) last
        in_specs = [
            pl.BlockSpec((tile_b, E_pad), lambda i, k: (i, 0)),   # x
            pl.BlockSpec((E_pad, tile_h), lambda i, k: (0, k)),   # W1 chunk
            pl.BlockSpec((1, tile_h), lambda i, k: (0, k)),       # b1 chunk
            pl.BlockSpec((tile_h, E_pad), lambda i, k: (k, 0)),   # W2 chunk
            _const((1, E_pad), lambda i, k: (0, 0)),              # b2
        ]
        out_spec = pl.BlockSpec((tile_b, E_pad), lambda i, k: (i, 0))
        if out_dtype == jnp.float32:
            kernel = _phi_kernel_streamed_f32
            scratch = []
        else:
            kernel = _phi_kernel_streamed_acc
            scratch = [pltpu.VMEM((tile_b, E_pad), jnp.float32)]
        dims = ("parallel", "arbitrary")

        flops = 4 * B_pad * E_pad * H_pad
        # Weights re-stream from HBM once per batch tile when chunked.
        w_traffic = num_b * (w1p.size * BF + w2p.size * BF
                             + b1p.size * F32 + b2p.size * F32)

    cost = pl.CostEstimate(
        flops=flops,
        transcendentals=0,
        bytes_accessed=xp.size * BF + B_pad * E_pad * out_bytes + w_traffic,
    )

    out = pl.pallas_call(
        kernel,
        out_shape=jax.ShapeDtypeStruct((B_pad, E_pad), out_dtype),
        grid_spec=pltpu.PrefetchScalarGridSpec(
            num_scalar_prefetch=0,
            grid=grid,
            in_specs=in_specs,
            out_specs=out_spec,
            scratch_shapes=scratch,
        ),
        compiler_params=pltpu.CompilerParams(
            dimension_semantics=dims,
            vmem_limit_bytes=vmem_limit,
        ),
        cost_estimate=cost,
    )(xp, w1p, b1p, w2p, b2p)

    # Slice off padding; padded rows/cols are exact zeros through the math.
    return out[:B, :E]


def init_params(key, embedding_dim, dtype=jnp.float32):
    """Deterministic init mimicking nn.Linear's uniform(-1/sqrt(fan_in), ...)."""
    E = embedding_dim
    H = 2 * E
    k1, k2, k3, k4 = jax.random.split(key, 4)
    bound1 = 1.0 / (E ** 0.5)
    bound2 = 1.0 / (H ** 0.5)
    # Stored as (in, out) == transposed PyTorch layout.
    w1 = jax.random.uniform(k1, (E, H), dtype, minval=-bound1, maxval=bound1)
    b1 = jax.random.uniform(k2, (1, H), dtype, minval=-bound1, maxval=bound1)
    w2 = jax.random.uniform(k3, (H, E), dtype, minval=-bound2, maxval=bound2)
    b2 = jax.random.uniform(k4, (1, E), dtype, minval=-bound2, maxval=bound2)
    return w1, b1, w2, b2


if __name__ == "__main__":
    key = jax.random.PRNGKey(0)
    kx, kp = jax.random.split(key)

    B, E = 8, 32  # batch=8, embedding_dim=32 (hidden = 2*E = 64)
    x = jax.random.normal(kx, (B, E), dtype=jnp.float32)
    w1, b1, w2, b2 = init_params(kp, E)

    # Pad/cast weights ONCE (hoisted); reused for every forward call.
    arrays, cfg = prepare_params(w1, b1, w2, b2)
    fwd = jax.jit(phi_forward, static_argnums=(2,))

    out = jax.block_until_ready(fwd(x, arrays, cfg))
    assert out.shape == (B, E) and out.dtype == x.dtype

    # Reference 1 (tight): identical bf16-input / f32-accumulate math.
    xb, w1b, w2b = (a.astype(jnp.bfloat16) for a in (x, w1, w2))
    h_ref = jnp.maximum(
        jnp.dot(xb, w1b, preferred_element_type=jnp.float32) + b1, 0.0)
    ref_bf16 = jnp.dot(h_ref.astype(jnp.bfloat16), w2b,
                       preferred_element_type=jnp.float32) + b2
    assert jnp.allclose(out, ref_bf16, atol=5e-3, rtol=5e-3)

    # Reference 2 (loose sanity): full-f32 PyTorch-equivalent math.
    ref_f32 = jnp.maximum(x @ w1 + b1, 0.0) @ w2 + b2
    assert jnp.allclose(out, ref_f32, atol=1e-1, rtol=1e-1)

    print("KERNEL_OK")
</pallas_src>

<mosaic_0001>
module attributes {stable_mosaic.version = 11 : i64} {
  func.func @_phi_kernel_resident(%arg0: i32, %arg1: i32, %arg2: memref<16x128xbf16, #tpu.memory_space<vmem>>, %arg3: memref<128x128xbf16, #tpu.memory_space<vmem>>, %arg4: memref<1x128xf32, #tpu.memory_space<vmem>>, %arg5: memref<128x128xbf16, #tpu.memory_space<vmem>>, %arg6: memref<1x128xf32, #tpu.memory_space<vmem>>, %arg7: memref<16x128xf32, #tpu.memory_space<vmem>>) attributes {dimension_semantics = [#tpu.dimension_semantics<parallel>, #tpu.dimension_semantics<parallel>], iteration_bounds = array<i64: 1, 1>, scalar_prefetch = 0 : i64, scratch_operands = 0 : i64, tpu.core_type = #tpu.core_type<tc>, window_params = [{transform_indices = @transform_0, window_bounds = array<i64: 16, 128>}, {pipeline_mode = #tpu.pipeline_mode<synchronous>, transform_indices = @transform_1, window_bounds = array<i64: 128, 128>}, {pipeline_mode = #tpu.pipeline_mode<synchronous>, transform_indices = @transform_2, window_bounds = array<i64: 1, 128>}, {pipeline_mode = #tpu.pipeline_mode<synchronous>, transform_indices = @transform_3, window_bounds = array<i64: 128, 128>}, {pipeline_mode = #tpu.pipeline_mode<synchronous>, transform_indices = @transform_4, window_bounds = array<i64: 1, 128>}, {transform_indices = @transform_5, window_bounds = array<i64: 16, 128>}]} {
    %c0 = arith.constant 0 : index
    %c0_0 = arith.constant 0 : index
    %0 = vector.load %arg2[%c0, %c0_0] : memref<16x128xbf16, #tpu.memory_space<vmem>>, vector<16x128xbf16>
    %c0_1 = arith.constant 0 : index
    %c0_2 = arith.constant 0 : index
    %1 = vector.load %arg3[%c0_1, %c0_2] : memref<128x128xbf16, #tpu.memory_space<vmem>>, vector<128x128xbf16>
    %cst = arith.constant dense<0.000000e+00> : vector<16x128xf32>
    %2 = tpu.matmul %0, %1, %cst {dimension_numbers = #tpu.dot_dimension_numbers<[1], [0], [0], [1], [0, 0, 1, 1], [], []>} : vector<16x128xbf16>, vector<128x128xbf16>, vector<16x128xf32> -> vector<16x128xf32>
    %c0_3 = arith.constant 0 : index
    %c0_4 = arith.constant 0 : index
    %3 = vector.load %arg4[%c0_3, %c0_4] : memref<1x128xf32, #tpu.memory_space<vmem>>, vector<1x128xf32>
    %4 = vector.broadcast %3 : vector<1x128xf32> to vector<16x128xf32>
    %5 = arith.addf %2, %4 : vector<16x128xf32>
    %cst_5 = arith.constant 0.000000e+00 : f32
    %6 = vector.broadcast %cst_5 : f32 to vector<16x128xf32>
    %7 = arith.maximumf %5, %6 : vector<16x128xf32>
    %8 = arith.truncf %7 : vector<16x128xf32> to vector<16x128xbf16>
    %c0_6 = arith.constant 0 : index
    %c0_7 = arith.constant 0 : index
    %9 = vector.load %arg5[%c0_6, %c0_7] : memref<128x128xbf16, #tpu.memory_space<vmem>>, vector<128x128xbf16>
    %cst_8 = arith.constant dense<0.000000e+00> : vector<16x128xf32>
    %10 = tpu.matmul %8, %9, %cst_8 {dimension_numbers = #tpu.dot_dimension_numbers<[1], [0], [0], [1], [0, 0, 1, 1], [], []>} : vector<16x128xbf16>, vector<128x128xbf16>, vector<16x128xf32> -> vector<16x128xf32>
    %c0_9 = arith.constant 0 : index
    %c0_10 = arith.constant 0 : index
    %11 = vector.load %arg6[%c0_9, %c0_10] : memref<1x128xf32, #tpu.memory_space<vmem>>, vector<1x128xf32>
    %12 = vector.broadcast %11 : vector<1x128xf32> to vector<16x128xf32>
    %13 = arith.addf %10, %12 : vector<16x128xf32>
    %c0_11 = arith.constant 0 : index
    %c0_12 = arith.constant 0 : index
    %14 = vector.load %arg7[%c0_11, %c0_12] : memref<16x128xf32, #tpu.memory_space<vmem>>, vector<16x128xf32>
    tpu.vector_store %arg7[%c0_11, %c0_12], %13 {strides = array<i32>} : memref<16x128xf32, #tpu.memory_space<vmem>>, vector<16x128xf32>,
    return
  }
  func.func @transform_0(%arg0: i32, %arg1: i32) -> (i32, i32) {
    %c0_i32 = arith.constant 0 : i32
    %c0_i32_0 = arith.constant 0 : i32
    return %arg0, %c0_i32 : i32, i32
  }
  func.func @transform_1(%arg0: i32, %arg1: i32) -> (i32, i32) {
    %c0_i32 = arith.constant 0 : i32
    %c0_i32_0 = arith.constant 0 : i32
    %c0_i32_1 = arith.constant 0 : i32
    return %c0_i32, %c0_i32_0 : i32, i32
  }
  func.func @transform_2(%arg0: i32, %arg1: i32) -> (i32, i32) {
    %c0_i32 = arith.constant 0 : i32
    %c0_i32_0 = arith.constant 0 : i32
    %c0_i32_1 = arith.constant 0 : i32
    return %c0_i32, %c0_i32_0 : i32, i32
  }
  func.func @transform_3(%arg0: i32, %arg1: i32) -> (i32, i32) {
    %c0_i32 = arith.constant 0 : i32
    %c0_i32_0 = arith.constant 0 : i32
    return %c0_i32, %arg1 : i32, i32
  }
  func.func @transform_4(%arg0: i32, %arg1: i32) -> (i32, i32) {
    %c0_i32 = arith.constant 0 : i32
    %c0_i32_0 = arith.constant 0 : i32
    return %c0_i32, %arg1 : i32, i32
  }
  func.func @transform_5(%arg0: i32, %arg1: i32) -> (i32, i32) {
    %c0_i32 = arith.constant 0 : i32
    return %arg0, %arg1 : i32, i32
  }
}

</mosaic_0001>

<llo_original>
// kernel: phi_forward.1
$region0: #{phi_forward.1}
  #allocation0 [shape = 'u32[]', space=smem, size = 0x4, offset = 0x4, fixed_abs, tag = 'smem constant byte address 0x4 - core index']
  #allocation1 [shape = 'u32[72,128]{1,0:T(1,128)}', space=vmem, size = 0x9000, scoped, tag = 'internal scratch']
  %s0 = inlined_call_operand.vmem [shape: bf16[16,128], index: 0, kind: input, shape index: {}]
  %s1 = inlined_call_operand.hbm [shape: bf16[128,128], index: 1, kind: input, shape index: {}]
  %s2 = inlined_call_operand.vmem [shape: f32[1,128], index: 2, kind: input, shape index: {}]
  %s3 = inlined_call_operand.hbm [shape: bf16[128,128], index: 3, kind: input, shape index: {}]
  %s4 = inlined_call_operand.vmem [shape: f32[1,128], index: 4, kind: input, shape index: {}]
  %s5 = inlined_call_operand.vmem [shape: f32[16,128], index: 5, kind: output, shape index: {}]
  %s6 = sld [smem:[#allocation0]]
  $region38: #{phi_forward.1} parent=0
    _
  %s8 = ssub.s32 1, %s6
  %s9 = scalar_select 0, %s8, %s6
  $region1: #{phi_forward.1} parent=0
    #allocation2 [shape = 'u8[32768]{0}', space=vmem, size = 0x8000, scoped, tag = 'input window, operand 1, single buffered']
    #allocation3 [shape = 's32[1]{0}', space=sflag, size = 0x4, scoped, tag = 'scoped memory for phi_forward.1']
    #allocation4 [shape = 'u8[32768]{0}', space=vmem, size = 0x8000, scoped, tag = 'input window, operand 3, single buffered']
    #allocation5 [shape = 's32[1]{0}', space=sflag, size = 0x4, scoped, tag = 'scoped memory for phi_forward.1']
    %10 = vsyncpa [#allocation3], 0
    %11 = vsyncpa [#allocation5], 0
    // Predicated region
    $region2: #{phi_forward.1} parent=1 // pred_check
      _
    $region3: #{phi_forward.1} parent=1 // pred_check_branch
      %13 = sbr.rel (0) target = $region5
    $region4: #{phi_forward.1} parent=1 // pred_region
      _
    $region5: #{phi_forward.1} parent=1 // pred_fallthru
      _
    // Predicated region
    $region6: #{phi_forward.1} parent=1 // pred_check
      _
    $region7: #{phi_forward.1} parent=1 // pred_check_branch
      %15 = sbr.rel (0) target = $region9
    $region8: #{phi_forward.1} parent=1 // pred_region
      %17 = vsyncadd [#allocation3], 0
      %s18 = sshll.u32 %s1, 4
      %s19 = int_to_ptr.hbm [resolvable:$true] %s18
      %s20 = sshll.u32 [#allocation2], 4
      %s21 = int_to_ptr.vmem [resolvable:$true] %s20
      %26 = dma.hbm_to_vmem [thread:$0]  %s19, 1024, %s21, [#allocation3], 64, 64, 4
    $region9: #{phi_forward.1} parent=1 // pred_fallthru
      _
    // Predicated region
    $region10: #{phi_forward.1} parent=1 // pred_check
      _
    $region11: #{phi_forward.1} parent=1 // pred_check_branch
      %28 = sbr.rel (0) target = $region13
    $region12: #{phi_forward.1} parent=1 // pred_region
      _
    $region13: #{phi_forward.1} parent=1 // pred_fallthru
      _
    // Predicated region
    $region14: #{phi_forward.1} parent=1 // pred_check
      _
    $region15: #{phi_forward.1} parent=1 // pred_check_branch
      %30 = sbr.rel (0) target = $region17
    $region16: #{phi_forward.1} parent=1 // pred_region
      %32 = vsyncadd [#allocation5], 0
      %s33 = sshll.u32 %s3, 4
      %s34 = int_to_ptr.hbm [resolvable:$true] %s33
      %s35 = sshll.u32 [#allocation4], 4
      %s36 = int_to_ptr.vmem [resolvable:$true] %s35
      %41 = dma.hbm_to_vmem [thread:$0]  %s34, 1024, %s36, [#allocation5], 64, 64, 4
    $region17: #{phi_forward.1} parent=1 // pred_fallthru
      _
    // Predicated region
    $region18: #{phi_forward.1} parent=1 // pred_check
      _
    $region19: #{phi_forward.1} parent=1 // pred_check_branch
      %43 = sbr.rel (0) target = $region21
    $region20: #{phi_forward.1} parent=1 // pred_region
      _
    $region21: #{phi_forward.1} parent=1 // pred_fallthru
      _
    // Predicated region
    $region22: #{phi_forward.1} parent=1 // pred_check
      _
    $region23: #{phi_forward.1} parent=1 // pred_check_branch
      %45 = sbr.rel (0) target = $region25
    $region24: #{phi_forward.1} parent=1 // pred_region
      %47 = dma.done [#allocation3], 1024
    $region25: #{phi_forward.1} parent=1 // pred_fallthru
      _
    // Predicated region
    $region26: #{phi_forward.1} parent=1 // pred_check
      _
    $region27: #{phi_forward.1} parent=1 // pred_check_branch
      %49 = sbr.rel (0) target = $region29
    $region28: #{phi_forward.1} parent=1 // pred_region
      %51 = dma.done [#allocation5], 1024
    $region29: #{phi_forward.1} parent=1 // pred_fallthru
      _
    %v52 = vld [vmem:[%s0] sm:$0xf]
    %v53 = vld [vmem:[%s0 + $0x4] sm:$0xf]
    %v54 = vld [vmem:[#allocation2] sm:$0xf]
    %v55 = vld [vmem:[#allocation2 + $0x4] sm:$0xf]
    %v56 = vld [vmem:[#allocation2 + $0x8] sm:$0xf]
    %v57 = vld [vmem:[#allocation2 + $0xc] sm:$0xf]
    %v58 = vld [vmem:[#allocation2 + $0x10] sm:$0xf]
    %v59 = vld [vmem:[#allocation2 + $0x14] sm:$0xf]
    %v60 = vld [vmem:[#allocation2 + $0x18] sm:$0xf]
    %v61 = vld [vmem:[#allocation2 + $0x1c] sm:$0xf]
    %v62 = vld [vmem:[#allocation2 + $0x20] sm:$0xf]
    %v63 = vld [vmem:[#allocation2 + $0x24] sm:$0xf]
    %v64 = vld [vmem:[#allocation2 + $0x28] sm:$0xf]
    %v65 = vld [vmem:[#allocation2 + $0x2c] sm:$0xf]
    %v66 = vld [vmem:[#allocation2 + $0x30] sm:$0xf]
    %v67 = vld [vmem:[#allocation2 + $0x34] sm:$0xf]
    %v68 = vld [vmem:[#allocation2 + $0x38] sm:$0xf]
    %v69 = vld [vmem:[#allocation2 + $0x3c] sm:$0xf]
    %v70 = vld [vmem:[%s2] sm:$0x1]
    %v72 = vperm.slane %v70, 0
    %v76 = vunpack.c.l.b16 %v52
    %v77 = vunpack.c.l.b16 %v53
    %v78 = vpack.c.b16 %v77, %v76
    %v96 = vunpack.c.l.b16 %v54
    %v97 = vunpack.c.l.b16 %v55
    %v98 = vunpack.c.l.b16 %v56
    %v99 = vunpack.c.l.b16 %v57
    %v100 = vunpack.c.l.b16 %v58
    %v101 = vunpack.c.l.b16 %v59
    %v102 = vunpack.c.l.b16 %v60
    %v103 = vunpack.c.l.b16 %v61
    %v104 = vunpack.c.l.b16 %v62
    %v105 = vunpack.c.l.b16 %v63
    %v106 = vunpack.c.l.b16 %v64
    %v107 = vunpack.c.l.b16 %v65
    %v108 = vunpack.c.l.b16 %v66
    %v109 = vunpack.c.l.b16 %v67
    %v110 = vunpack.c.l.b16 %v68
    %v111 = vunpack.c.l.b16 %v69
    %v112 = vpack.c.b16 %v97, %v96
    %v113 = vpack.c.b16 %v99, %v98
    %v114 = vpack.c.b16 %v101, %v100
    %v115 = vpack.c.b16 %v103, %v102
    %v116 = vpack.c.b16 %v105, %v104
    %v117 = vpack.c.b16 %v107, %v106
    %v118 = vpack.c.b16 %v109, %v108
    %v119 = vpack.c.b16 %v111, %v110
    %128 = vmatpush.bf16.msra.mxu0 %v119
    %129 = vmatpush.bf16.msra.mxu0 %v118
    %130 = vmatpush.bf16.msra.mxu0 %v117
    %131 = vmatpush.bf16.msra.mxu0 %v116
    %132 = vmatpush.bf16.msra.mxu0 %v115
    %133 = vmatpush.bf16.msra.mxu0 %v114
    %134 = vmatpush.bf16.msra.mxu0 %v113
    %135 = vmatpush.bf16.msra.mxu0 %v112
    %136 = vmatmul.bf16.gmra.mxu0 %v78
    %v137 = vpop.f32.mrf.mxu0
    %v138 = vadd.f32 %v72, %v137
    %v139 = vpop.f32.mrf.mxu0
    %v140 = vadd.f32 %v72, %v139
    %141 = vdwg.mxu0
    %v142 = vmax.f32 %v138, 0.0
    %v143 = vmax.f32 %v140, 0.0
    %v144 = vpack.c.bf16 %v143, %v142
    %v145 = vld [vmem:[#allocation4] sm:$0xf]
    %v146 = vld [vmem:[#allocation4 + $0x4] sm:$0xf]
    %v147 = vld [vmem:[#allocation4 + $0x8] sm:$0xf]
    %v148 = vld [vmem:[#allocation4 + $0xc] sm:$0xf]
    %v149 = vld [vmem:[#allocation4 + $0x10] sm:$0xf]
    %v150 = vld [vmem:[#allocation4 + $0x14] sm:$0xf]
    %v151 = vld [vmem:[#allocation4 + $0x18] sm:$0xf]
    %v152 = vld [vmem:[#allocation4 + $0x1c] sm:$0xf]
    %v153 = vld [vmem:[#allocation4 + $0x20] sm:$0xf]
    %v154 = vld [vmem:[#allocation4 + $0x24] sm:$0xf]
    %v155 = vld [vmem:[#allocation4 + $0x28] sm:$0xf]
    %v156 = vld [vmem:[#allocation4 + $0x2c] sm:$0xf]
    %v157 = vld [vmem:[#allocation4 + $0x30] sm:$0xf]
    %v158 = vld [vmem:[#allocation4 + $0x34] sm:$0xf]
    %v159 = vld [vmem:[#allocation4 + $0x38] sm:$0xf]
    %v160 = vld [vmem:[#allocation4 + $0x3c] sm:$0xf]
    %v161 = vld [vmem:[%s4] sm:$0x1]
    %v163 = vperm.slane %v161, 0
    %v181 = vunpack.c.l.b16 %v145
    %v182 = vunpack.c.l.b16 %v146
    %v183 = vunpack.c.l.b16 %v147
    %v184 = vunpack.c.l.b16 %v148
    %v185 = vunpack.c.l.b16 %v149
    %v186 = vunpack.c.l.b16 %v150
    %v187 = vunpack.c.l.b16 %v151
    %v188 = vunpack.c.l.b16 %v152
    %v189 = vunpack.c.l.b16 %v153
    %v190 = vunpack.c.l.b16 %v154
    %v191 = vunpack.c.l.b16 %v155
    %v192 = vunpack.c.l.b16 %v156
    %v193 = vunpack.c.l.b16 %v157
    %v194 = vunpack.c.l.b16 %v158
    %v195 = vunpack.c.l.b16 %v159
    %v196 = vunpack.c.l.b16 %v160
    %v197 = vpack.c.b16 %v182, %v181
    %v198 = vpack.c.b16 %v184, %v183
    %v199 = vpack.c.b16 %v186, %v185
    %v200 = vpack.c.b16 %v188, %v187
    %v201 = vpack.c.b16 %v190, %v189
    %v202 = vpack.c.b16 %v192, %v191
    %v203 = vpack.c.b16 %v194, %v193
    %v204 = vpack.c.b16 %v196, %v195
    %213 = vmatpush.bf16.msra.mxu0 %v204
    %214 = vmatpush.bf16.msra.mxu0 %v203
    %215 = vmatpush.bf16.msra.mxu0 %v202
    %216 = vmatpush.bf16.msra.mxu0 %v201
    %217 = vmatpush.bf16.msra.mxu0 %v200
    %218 = vmatpush.bf16.msra.mxu0 %v199
    %219 = vmatpush.bf16.msra.mxu0 %v198
    %220 = vmatpush.bf16.msra.mxu0 %v197
    %221 = vmatmul.bf16.gmra.mxu0 %v144
    %v222 = vpop.f32.mrf.mxu0
    %v223 = vadd.f32 %v163, %v222
    %v224 = vpop.f32.mrf.mxu0
    %v225 = vadd.f32 %v163, %v224
    %226 = vdwg.mxu0
    %227 = vst [vmem:[%s5] sm:$0xff] %v223
    %228 = vst [vmem:[%s5 + $0x8] sm:$0xff] %v225
    // Predicated region
    $region30: #{phi_forward.1} parent=1 // pred_check
      _
    $region31: #{phi_forward.1} parent=1 // pred_check_branch
      %230 = sbr.rel (0) target = $region33
    $region32: #{phi_forward.1} parent=1 // pred_region
      _
    $region33: #{phi_forward.1} parent=1 // pred_fallthru
      _
    // Predicated region
    $region34: #{phi_forward.1} parent=1 // pred_check
      _
    $region35: #{phi_forward.1} parent=1 // pred_check_branch
      %232 = sbr.rel (0) target = $region37
    $region36: #{phi_forward.1} parent=1 // pred_region
      _
    $region37: #{phi_forward.1} parent=1 // pred_fallthru
      _
    %233 = vsyncpa [#allocation3], 1
    %234 = vsyncpa [#allocation5], 1

</llo_original>
